<compile_context>
chip_gen: v6e
topology: v6e:2x2x1
jax: 0.10.0
libtpu: 0.0.40
codegen_flags: <defaults>
</compile_context>

<pallas_src>
import math

import jax
import jax.numpy as jnp
from jax.experimental import pallas as pl
from jax.experimental.pallas import tpu as pltpu


def _reward_mlp_kernel(x_ref, w1_ref, b1_ref, w2_ref, b2_ref, w3_ref, b3_ref,
                       out_ref):
    cdt = w1_ref.dtype                       # compute dtype of the MXU matmuls

    x = x_ref[...].astype(cdt)                                   # (TB, D_in)

    # Layer 1: Linear + ReLU (MXU matmul, f32 accumulation, f32 epilogue).
    h1 = jnp.dot(x, w1_ref[...], preferred_element_type=jnp.float32)
    h1 = jnp.maximum(h1 + b1_ref[...], 0.0)                      # (TB, H) f32
    # TODO(synk): Dropout(0.1) is identity in eval/inference mode (as used by
    # compute_reward); training-mode stochastic dropout not implemented here.

    # Layer 2: Linear + ReLU.
    h2 = jnp.dot(h1.astype(cdt), w2_ref[...],
                 preferred_element_type=jnp.float32)
    h2 = jnp.maximum(h2 + b2_ref[...], 0.0)                      # (TB, H) f32

    # Reward head Linear(H, 1): VPU multiply + lane reduce (avoids an N=1 MXU
    # matmul that would use 1 of 128/256 result columns).  b3 is an SMEM scalar.
    logit = jnp.sum(h2 * w3_ref[...], axis=-1, keepdims=True) + b3_ref[0]
    out_ref[...] = jax.nn.sigmoid(logit)                         # (TB, 1) f32


def _round_up(x, m):
    return ((x + m - 1) // m) * m


def learnable_reward_forward(features, params, *, block_b=1024,
                             compute_dtype=jnp.bfloat16):
    """features: (B, D_in), any float dtype. Returns sigmoid reward (B, 1) f32."""
    w1, b1, w2, b2, w3, b3 = (params["w1"], params["b1"], params["w2"],
                              params["b2"], params["w3"], params["b3"])
    if not jnp.issubdtype(features.dtype, jnp.floating):
        features = features.astype(jnp.float32)
    B, D_in = features.shape
    H = w1.shape[1]

    # Weights for the two MXU matmuls in the compute dtype (tiny, cast once per
    # call).  Head weight becomes a (1, H) f32 row for the VPU multiply; b3
    # becomes a 1-D SMEM scalar.  Biases stay f32 (epilogue is f32).
    w1c = w1.astype(compute_dtype)
    w2c = w2.astype(compute_dtype)
    w3_row = jnp.reshape(w3, (1, H)).astype(jnp.float32)
    b1r = jnp.reshape(b1, (1, H)).astype(jnp.float32)
    b2r = jnp.reshape(b2, (1, H)).astype(jnp.float32)
    b3_s = jnp.reshape(b3, (1,)).astype(jnp.float32)

    # Batch tile: multiple of 8 sublanes; capped at ceil(B/2) so the batch grid
    # has >= 2 steps whenever B > 8 (lets v7x's second TensorCore take work).
    TB = min(block_b, _round_up(pl.cdiv(B, 2), 8))
    TB = _round_up(max(TB, 8), 8)
    grid = (pl.cdiv(B, TB),)   # ragged tail handled by Pallas masking (no pad)

    # Advisory cost hint so XLA overlaps producers/consumers with this
    # bandwidth-bound custom call.
    x_bytes = B * D_in * jnp.dtype(features.dtype).itemsize
    w_bytes = (D_in * H + H * H) * jnp.dtype(compute_dtype).itemsize
    cost = pl.CostEstimate(
        flops=2 * B * (D_in * H + H * H + H),
        transcendentals=B,
        bytes_accessed=x_bytes + w_bytes + (3 * H + 1) * 4 + B * 4)

    out = pl.pallas_call(
        _reward_mlp_kernel,
        out_shape=jax.ShapeDtypeStruct((B, 1), jnp.float32),
        grid=grid,
        in_specs=[
            # Streamed activation tile (double-buffered by the pipeline).
            pl.BlockSpec((TB, D_in), lambda i: (i, 0)),
            # Weights / biases: constant index_maps -> DMA'd once, VMEM-resident.
            pl.BlockSpec((D_in, H), lambda i: (0, 0)),   # w1
            pl.BlockSpec((1, H),    lambda i: (0, 0)),   # b1
            pl.BlockSpec((H, H),    lambda i: (0, 0)),   # w2
            pl.BlockSpec((1, H),    lambda i: (0, 0)),   # b2
            pl.BlockSpec((1, H),    lambda i: (0, 0)),   # w3 (row)
            # Head bias as an SMEM scalar.
            pl.BlockSpec(memory_space=pltpu.MemorySpace.SMEM),
        ],
        out_specs=pl.BlockSpec((TB, 1), lambda i: (i, 0)),
        compiler_params=pltpu.CompilerParams(
            dimension_semantics=("parallel",)),
        cost_estimate=cost,
    )(features, w1c, b1r, w2c, b2r, w3_row, b3_s)

    return out


def _xavier_uniform(key, fan_in, fan_out):
    # Matches torch.nn.init.xavier_uniform_ bound = sqrt(6 / (fan_in + fan_out)).
    bound = math.sqrt(6.0 / (fan_in + fan_out))
    return jax.random.uniform(key, (fan_in, fan_out), jnp.float32,
                              minval=-bound, maxval=bound)


def init_params(key, input_dim, hidden_dim):
    k1, k2, k3 = jax.random.split(key, 3)
    return {
        "w1": _xavier_uniform(k1, input_dim, hidden_dim),
        "b1": jnp.zeros((1, hidden_dim), jnp.float32),
        "w2": _xavier_uniform(k2, hidden_dim, hidden_dim),
        "b2": jnp.zeros((1, hidden_dim), jnp.float32),
        "w3": _xavier_uniform(k3, hidden_dim, 1),
        "b3": jnp.zeros((1, 1), jnp.float32),
    }


if __name__ == "__main__":
    # Small shapes consistent with the module (input_dim/hidden_dim configurable).
    batch = 2
    input_dim = 64
    hidden_dim = 32

    root = jax.random.PRNGKey(0)
    k_feat, k_feat2, k_params = jax.random.split(root, 3)
    params = init_params(k_params, input_dim, hidden_dim)

    # Pure-JAX reference (f32).
    def ref(x, p):
        h1 = jnp.maximum(x @ p["w1"] + p["b1"], 0.0)
        h2 = jnp.maximum(h1 @ p["w2"] + p["b2"], 0.0)
        return jax.nn.sigmoid(h2 @ p["w3"] + p["b3"])

    # 1) Module-sized batch (stand-in for extract_features()), exact f32 path.
    feats_small = jax.random.normal(k_feat, (batch, input_dim), jnp.float32)
    r_small = learnable_reward_forward(feats_small, params,
                                       compute_dtype=jnp.float32)
    jax.block_until_ready(r_small)
    assert r_small.shape == (batch, 1)
    assert bool(jnp.all((r_small > 0.0) & (r_small < 1.0)))
    assert jnp.allclose(r_small, ref(feats_small, params), atol=1e-5, rtol=1e-5)

    # 2) Larger batch exercising multi-tile grid + masked ragged tail (f32,
    #    block_b=8 -> grid of 3 steps, last block partial, no jnp.pad copy).
    big_b = 20
    feats_big = jax.random.normal(k_feat2, (big_b, input_dim), jnp.float32)
    r_big = learnable_reward_forward(feats_big, params, block_b=8,
                                     compute_dtype=jnp.float32)
    jax.block_until_ready(r_big)
    assert r_big.shape == (big_b, 1)
    assert jnp.allclose(r_big, ref(feats_big, params), atol=1e-5, rtol=1e-5)

    # 3) Default bf16-matmul path (f32 accumulation) streaming a bf16 input
    #    (native-dtype x stream, halved DMA bytes) vs f32 reference.
    r_bf16 = learnable_reward_forward(feats_big.astype(jnp.bfloat16), params,
                                      block_b=8)
    jax.block_until_ready(r_bf16)
    assert r_bf16.shape == (big_b, 1)
    assert jnp.allclose(r_bf16, ref(feats_big, params), atol=2e-2)

    print("KERNEL_OK")
</pallas_src>

<mosaic_0001>
module attributes {stable_mosaic.version = 11 : i64} {
  func.func @_reward_mlp_kernel(%arg0: i32, %arg1: memref<8x64xf32, #tpu.memory_space<vmem>>, %arg2: memref<64x32xf32, #tpu.memory_space<vmem>>, %arg3: memref<1x32xf32, #tpu.memory_space<vmem>>, %arg4: memref<32x32xf32, #tpu.memory_space<vmem>>, %arg5: memref<1x32xf32, #tpu.memory_space<vmem>>, %arg6: memref<1x32xf32, #tpu.memory_space<vmem>>, %arg7: memref<1xf32, #tpu.memory_space<smem>>, %arg8: memref<8x1xf32, #tpu.memory_space<vmem>>) attributes {dimension_semantics = [#tpu.dimension_semantics<parallel>], iteration_bounds = array<i64: 1>, scalar_prefetch = 0 : i64, scratch_operands = 0 : i64, tpu.core_type = #tpu.core_type<tc>, window_params = [{transform_indices = @transform_0, window_bounds = array<i64: 8, 64>}, {pipeline_mode = #tpu.pipeline_mode<synchronous>, transform_indices = @transform_1, window_bounds = array<i64: 64, 32>}, {pipeline_mode = #tpu.pipeline_mode<synchronous>, transform_indices = @transform_2, window_bounds = array<i64: 1, 32>}, {pipeline_mode = #tpu.pipeline_mode<synchronous>, transform_indices = @transform_3, window_bounds = array<i64: 32, 32>}, {pipeline_mode = #tpu.pipeline_mode<synchronous>, transform_indices = @transform_4, window_bounds = array<i64: 1, 32>}, {pipeline_mode = #tpu.pipeline_mode<synchronous>, transform_indices = @transform_5, window_bounds = array<i64: 1, 32>}, {transform_indices = @transform_6, window_bounds = array<i64: 1>}, {transform_indices = @transform_7, window_bounds = array<i64: 8, 1>}]} {
    %c0 = arith.constant 0 : index
    %c0_0 = arith.constant 0 : index
    %0 = vector.load %arg1[%c0, %c0_0] : memref<8x64xf32, #tpu.memory_space<vmem>>, vector<8x64xf32>
    %c0_1 = arith.constant 0 : index
    %c0_2 = arith.constant 0 : index
    %1 = vector.load %arg2[%c0_1, %c0_2] : memref<64x32xf32, #tpu.memory_space<vmem>>, vector<64x32xf32>
    %cst = arith.constant dense<0.000000e+00> : vector<8x32xf32>
    %2 = tpu.matmul %0, %1, %cst {dimension_numbers = #tpu.dot_dimension_numbers<[1], [0], [0], [1], [0, 0, 1, 1], [], []>} : vector<8x64xf32>, vector<64x32xf32>, vector<8x32xf32> -> vector<8x32xf32>
    %c0_3 = arith.constant 0 : index
    %c0_4 = arith.constant 0 : index
    %3 = vector.load %arg3[%c0_3, %c0_4] : memref<1x32xf32, #tpu.memory_space<vmem>>, vector<1x32xf32>
    %4 = vector.broadcast %3 : vector<1x32xf32> to vector<8x32xf32>
    %5 = arith.addf %2, %4 : vector<8x32xf32>
    %cst_5 = arith.constant 0.000000e+00 : f32
    %6 = vector.broadcast %cst_5 : f32 to vector<8x32xf32>
    %7 = arith.maximumf %5, %6 : vector<8x32xf32>
    %c0_6 = arith.constant 0 : index
    %c0_7 = arith.constant 0 : index
    %8 = vector.load %arg4[%c0_6, %c0_7] : memref<32x32xf32, #tpu.memory_space<vmem>>, vector<32x32xf32>
    %cst_8 = arith.constant dense<0.000000e+00> : vector<8x32xf32>
    %9 = tpu.matmul %7, %8, %cst_8 {dimension_numbers = #tpu.dot_dimension_numbers<[1], [0], [0], [1], [0, 0, 1, 1], [], []>} : vector<8x32xf32>, vector<32x32xf32>, vector<8x32xf32> -> vector<8x32xf32>
    %c0_9 = arith.constant 0 : index
    %c0_10 = arith.constant 0 : index
    %10 = vector.load %arg5[%c0_9, %c0_10] : memref<1x32xf32, #tpu.memory_space<vmem>>, vector<1x32xf32>
    %11 = vector.broadcast %10 : vector<1x32xf32> to vector<8x32xf32>
    %12 = arith.addf %9, %11 : vector<8x32xf32>
    %cst_11 = arith.constant 0.000000e+00 : f32
    %13 = vector.broadcast %cst_11 : f32 to vector<8x32xf32>
    %14 = arith.maximumf %12, %13 : vector<8x32xf32>
    %c0_12 = arith.constant 0 : index
    %c0_13 = arith.constant 0 : index
    %15 = vector.load %arg6[%c0_12, %c0_13] : memref<1x32xf32, #tpu.memory_space<vmem>>, vector<1x32xf32>
    %16 = vector.broadcast %15 : vector<1x32xf32> to vector<8x32xf32>
    %17 = arith.mulf %14, %16 : vector<8x32xf32>
    %cst_14 = arith.constant dense<0.000000e+00> : vector<8xf32>
    %18 = vector.multi_reduction <add>, %17, %cst_14 [1] : vector<8x32xf32> to vector<8xf32>
    %19 = vector.shape_cast %18 : vector<8xf32> to vector<8x1xf32>
    %c0_15 = arith.constant 0 : index
    %20 = memref.load %arg7[%c0_15] : memref<1xf32, #tpu.memory_space<smem>>
    %21 = vector.broadcast %20 : f32 to vector<8x1xf32>
    %22 = arith.addf %19, %21 : vector<8x1xf32>
    %23 = arith.negf %22 : vector<8x1xf32>
    %24 = math.exp %23 : vector<8x1xf32>
    %cst_16 = arith.constant 1.000000e+00 : f32
    %25 = vector.broadcast %cst_16 : f32 to vector<8x1xf32>
    %26 = arith.addf %25, %24 : vector<8x1xf32>
    %27 = arith.divf %25, %26 : vector<8x1xf32>
    %c0_17 = arith.constant 0 : index
    %c0_18 = arith.constant 0 : index
    %28 = vector.load %arg8[%c0_17, %c0_18] : memref<8x1xf32, #tpu.memory_space<vmem>>, vector<8x1xf32>
    tpu.vector_store %arg8[%c0_17, %c0_18], %27 {strides = array<i32>} : memref<8x1xf32, #tpu.memory_space<vmem>>, vector<8x1xf32>,
    return
  }
  func.func @transform_0(%arg0: i32) -> (i32, i32) {
    %c0_i32 = arith.constant 0 : i32
    %c0_i32_0 = arith.constant 0 : i32
    return %arg0, %c0_i32 : i32, i32
  }
  func.func @transform_1(%arg0: i32) -> (i32, i32) {
    %c0_i32 = arith.constant 0 : i32
    %c0_i32_0 = arith.constant 0 : i32
    %c0_i32_1 = arith.constant 0 : i32
    return %c0_i32, %c0_i32_0 : i32, i32
  }
  func.func @transform_2(%arg0: i32) -> (i32, i32) {
    %c0_i32 = arith.constant 0 : i32
    %c0_i32_0 = arith.constant 0 : i32
    %c0_i32_1 = arith.constant 0 : i32
    return %c0_i32, %c0_i32_0 : i32, i32
  }
  func.func @transform_3(%arg0: i32) -> (i32, i32) {
    %c0_i32 = arith.constant 0 : i32
    %c0_i32_0 = arith.constant 0 : i32
    %c0_i32_1 = arith.constant 0 : i32
    return %c0_i32, %c0_i32_0 : i32, i32
  }
  func.func @transform_4(%arg0: i32) -> (i32, i32) {
    %c0_i32 = arith.constant 0 : i32
    %c0_i32_0 = arith.constant 0 : i32
    %c0_i32_1 = arith.constant 0 : i32
    return %c0_i32, %c0_i32_0 : i32, i32
  }
  func.func @transform_5(%arg0: i32) -> (i32, i32) {
    %c0_i32 = arith.constant 0 : i32
    %c0_i32_0 = arith.constant 0 : i32
    %c0_i32_1 = arith.constant 0 : i32
    return %c0_i32, %c0_i32_0 : i32, i32
  }
  func.func @transform_6(%arg0: i32) -> i32 {
    %c0_i32 = arith.constant 0 : i32
    %c0_i32_0 = arith.constant 0 : i32
    return %c0_i32 : i32
  }
  func.func @transform_7(%arg0: i32) -> (i32, i32) {
    %c0_i32 = arith.constant 0 : i32
    %c0_i32_0 = arith.constant 0 : i32
    return %arg0, %c0_i32 : i32, i32
  }
}

</mosaic_0001>

<llo_original>
// kernel: tpu_custom_call.1
$region0: #{tpu_custom_call.1}
  #allocation0 [shape = 'u32[]', space=smem, size = 0x4, offset = 0x4, fixed_abs, tag = 'smem constant byte address 0x4 - core index']
  #allocation1 [shape = 'u32[144,128]{1,0:T(1,128)}', space=vmem, size = 0x12000, scoped, tag = 'internal scratch']
  #allocation2 [shape = 'f32[1]{0:T(128)S(6)}', space=smem, size = 0x200, scoped, tag = 'scoped memory for tpu_custom_call.1']
  %s0 = inlined_call_operand.vmem [shape: f32[2,64], index: 0, kind: input, shape index: {}]
  %s1 = inlined_call_operand.vmem [shape: f32[64,32], index: 1, kind: input, shape index: {}]
  %s2 = inlined_call_operand.vmem [shape: f32[1,32], index: 2, kind: input, shape index: {}]
  %s3 = inlined_call_operand.vmem [shape: f32[32,32], index: 3, kind: input, shape index: {}]
  %s4 = inlined_call_operand.vmem [shape: f32[1,32], index: 4, kind: input, shape index: {}]
  %s5 = inlined_call_operand.vmem [shape: f32[1,32], index: 5, kind: input, shape index: {}]
  %s6 = inlined_call_operand.<no memory space> [shape: f32[1], index: 6, kind: input, shape index: {}]
  %s7 = inlined_call_operand.vmem [shape: f32[2,1], index: 7, kind: output, shape index: {}]
  %s8 = sld [smem:[#allocation0]]
  $region68: #{tpu_custom_call.1} parent=0
    _
  %s10 = ssub.s32 1, %s8
  %s11 = scalar_select 0, %s10, %s8
  %12 = sst [smem:[#allocation2]] %s6
  $region1: #{tpu_custom_call.1} parent=0
    #allocation3 [shape = 'u8[4096]{0}', space=vmem, size = 0x1000, scoped, tag = 'output window, operand 0, single buffered']
    // Predicated region
    $region2: #{tpu_custom_call.1} parent=1 // pred_check
      _
    $region3: #{tpu_custom_call.1} parent=1 // pred_check_branch
      %14 = sbr.rel (0) target = $region5
    $region4: #{tpu_custom_call.1} parent=1 // pred_region
      _
    $region5: #{tpu_custom_call.1} parent=1 // pred_fallthru
      _
    // Predicated region
    $region6: #{tpu_custom_call.1} parent=1 // pred_check
      _
    $region7: #{tpu_custom_call.1} parent=1 // pred_check_branch
      %16 = sbr.rel (0) target = $region9
    $region8: #{tpu_custom_call.1} parent=1 // pred_region
      _
    $region9: #{tpu_custom_call.1} parent=1 // pred_fallthru
      _
    // Predicated region
    $region10: #{tpu_custom_call.1} parent=1 // pred_check
      _
    $region11: #{tpu_custom_call.1} parent=1 // pred_check_branch
      %18 = sbr.rel (0) target = $region13
    $region12: #{tpu_custom_call.1} parent=1 // pred_region
      _
    $region13: #{tpu_custom_call.1} parent=1 // pred_fallthru
      _
    // Predicated region
    $region14: #{tpu_custom_call.1} parent=1 // pred_check
      _
    $region15: #{tpu_custom_call.1} parent=1 // pred_check_branch
      %20 = sbr.rel (0) target = $region17
    $region16: #{tpu_custom_call.1} parent=1 // pred_region
      _
    $region17: #{tpu_custom_call.1} parent=1 // pred_fallthru
      _
    // Predicated region
    $region18: #{tpu_custom_call.1} parent=1 // pred_check
      _
    $region19: #{tpu_custom_call.1} parent=1 // pred_check_branch
      %22 = sbr.rel (0) target = $region21
    $region20: #{tpu_custom_call.1} parent=1 // pred_region
      _
    $region21: #{tpu_custom_call.1} parent=1 // pred_fallthru
      _
    // Predicated region
    $region22: #{tpu_custom_call.1} parent=1 // pred_check
      _
    $region23: #{tpu_custom_call.1} parent=1 // pred_check_branch
      %24 = sbr.rel (0) target = $region25
    $region24: #{tpu_custom_call.1} parent=1 // pred_region
      _
    $region25: #{tpu_custom_call.1} parent=1 // pred_fallthru
      _
    // Predicated region
    $region26: #{tpu_custom_call.1} parent=1 // pred_check
      _
    $region27: #{tpu_custom_call.1} parent=1 // pred_check_branch
      %26 = sbr.rel (0) target = $region29
    $region28: #{tpu_custom_call.1} parent=1 // pred_region
      _
    $region29: #{tpu_custom_call.1} parent=1 // pred_fallthru
      _
    %v27 = vld [vmem:[%s0] sm:$0xff]
    %v28 = vld [vmem:[%s1] sm:$0xff]
    %v29 = vld [vmem:[%s1 + $0x8] sm:$0xff]
    %v30 = vld [vmem:[%s1 + $0x10] sm:$0xff]
    %v31 = vld [vmem:[%s1 + $0x18] sm:$0xff]
    %v32 = vld [vmem:[%s1 + $0x20] sm:$0xff]
    %v33 = vld [vmem:[%s1 + $0x28] sm:$0xff]
    %v34 = vld [vmem:[%s1 + $0x30] sm:$0xff]
    %v35 = vld [vmem:[%s1 + $0x38] sm:$0xff]
    %v36 = vld [vmem:[%s2] sm:$0x1]
    %v38 = vlaneseq
    %v39 = vshrl.u32 %v38, 7
    %v40 = vsub.s32 0, %v39
    %v41 = vrot.slane %v36, %v40
    %vm43 = vcmask 523264
    %v45 = vsel %vm43, %v27, 0
    %47 = vmatprep.subr.mxu0 0.0
    %48 = vmatpush1.msra.mxu0 0.0
    %49 = vmatprep.subr.mxu0 0.0
    %50 = vmatpush1.msra.mxu0 0.0
    %51 = vmatprep.subr.mxu0 0.0
    %52 = vmatpush1.msra.mxu0 0.0
    %53 = vmatprep.subr.mxu0 0.0
    %54 = vmatpush1.msra.mxu0 0.0
    %55 = vmatprep.subr.mxu0 0.0
    %56 = vmatpush1.msra.mxu0 0.0
    %57 = vmatprep.subr.mxu0 0.0
    %58 = vmatpush1.msra.mxu0 0.0
    %59 = vmatprep.subr.mxu0 0.0
    %60 = vmatpush1.msra.mxu0 0.0
    %61 = vmatprep.subr.mxu0 0.0
    %62 = vmatpush1.msra.mxu0 0.0
    %63 = vmatprep.subr.mxu0 0.0
    %64 = vmatpush1.msra.mxu0 %v35
    %65 = vmatprep.subr.mxu0 0.0
    %66 = vmatpush1.msra.mxu0 %v34
    %67 = vmatprep.subr.mxu0 0.0
    %68 = vmatpush1.msra.mxu0 %v33
    %69 = vmatprep.subr.mxu0 0.0
    %70 = vmatpush1.msra.mxu0 %v32
    %71 = vmatprep.subr.mxu0 0.0
    %72 = vmatpush1.msra.mxu0 %v31
    %73 = vmatprep.subr.mxu0 0.0
    %74 = vmatpush1.msra.mxu0 %v30
    %75 = vmatprep.subr.mxu0 0.0
    %76 = vmatpush1.msra.mxu0 %v29
    %77 = vmatprep.subr.mxu0 0.0
    %78 = vmatpush1.msra.mxu0 %v28
    %79 = vmatprep.subr.mxu0 0.0
    %80 = vmatpush2.msra.mxu0 0.0
    %81 = vmatprep.subr.mxu0 0.0
    %82 = vmatpush2.msra.mxu0 0.0
    %83 = vmatprep.subr.mxu0 0.0
    %84 = vmatpush2.msra.mxu0 0.0
    %85 = vmatprep.subr.mxu0 0.0
    %86 = vmatpush2.msra.mxu0 0.0
    %87 = vmatprep.subr.mxu0 0.0
    %88 = vmatpush2.msra.mxu0 0.0
    %89 = vmatprep.subr.mxu0 0.0
    %90 = vmatpush2.msra.mxu0 0.0
    %91 = vmatprep.subr.mxu0 0.0
    %92 = vmatpush2.msra.mxu0 0.0
    %93 = vmatprep.subr.mxu0 0.0
    %94 = vmatpush2.msra.mxu0 0.0
    %95 = vmatprep.subr.mxu0 0.0
    %96 = vmatpush2.msra.mxu0 0.0
    %97 = vmatprep.subr.mxu0 0.0
    %98 = vmatpush2.msra.mxu0 0.0
    %99 = vmatprep.subr.mxu0 0.0
    %100 = vmatpush2.msra.mxu0 0.0
    %101 = vmatprep.subr.mxu0 0.0
    %102 = vmatpush2.msra.mxu0 0.0
    %103 = vmatprep.subr.mxu0 0.0
    %104 = vmatpush2.msra.mxu0 0.0
    %105 = vmatprep.subr.mxu0 0.0
    %106 = vmatpush2.msra.mxu0 0.0
    %107 = vmatprep.subr.mxu0 0.0
    %108 = vmatpush2.msra.mxu0 0.0
    %109 = vmatprep.subr.mxu0 0.0
    %110 = vmatpush2.msra.mxu0 0.0
    %111 = vmatprep.mubr.f32.mxu0 0.0
    %112 = vmatmul.mubr.f32.gmra.mxu0 %v45
    %v113 = vpop.f32.mrf.mxu0
    %v114 = vadd.f32 %v41, %v113
    %v115 = vpop.f32.mrf.mxu0
    %116 = vdwg.mxu0
    %v117 = vmax.f32 %v114, 0.0
    %v118 = vld [vmem:[%s3] sm:$0xff]
    %v119 = vld [vmem:[%s3 + $0x8] sm:$0xff]
    %v120 = vld [vmem:[%s3 + $0x10] sm:$0xff]
    %v121 = vld [vmem:[%s3 + $0x18] sm:$0xff]
    %v122 = vld [vmem:[%s4] sm:$0x1]
    %v124 = vlaneseq
    %v125 = vshrl.u32 %v124, 7
    %v126 = vsub.s32 0, %v125
    %v127 = vrot.slane %v122, %v126
    %vm129 = vcmask 261120
    %v131 = vsel %vm129, %v117, 0
    %133 = vmatprep.subr.mxu0 0.0
    %134 = vmatpush1.msra.mxu0 0.0
    %135 = vmatprep.subr.mxu0 0.0
    %136 = vmatpush1.msra.mxu0 0.0
    %137 = vmatprep.subr.mxu0 0.0
    %138 = vmatpush1.msra.mxu0 0.0
    %139 = vmatprep.subr.mxu0 0.0
    %140 = vmatpush1.msra.mxu0 0.0
    %141 = vmatprep.subr.mxu0 0.0
    %142 = vmatpush1.msra.mxu0 0.0
    %143 = vmatprep.subr.mxu0 0.0
    %144 = vmatpush1.msra.mxu0 0.0
    %145 = vmatprep.subr.mxu0 0.0
    %146 = vmatpush1.msra.mxu0 0.0
    %147 = vmatprep.subr.mxu0 0.0
    %148 = vmatpush1.msra.mxu0 0.0
    %149 = vmatprep.subr.mxu0 0.0
    %150 = vmatpush1.msra.mxu0 0.0
    %151 = vmatprep.subr.mxu0 0.0
    %152 = vmatpush1.msra.mxu0 0.0
    %153 = vmatprep.subr.mxu0 0.0
    %154 = vmatpush1.msra.mxu0 0.0
    %155 = vmatprep.subr.mxu0 0.0
    %156 = vmatpush1.msra.mxu0 0.0
    %157 = vmatprep.subr.mxu0 0.0
    %158 = vmatpush1.msra.mxu0 %v121
    %159 = vmatprep.subr.mxu0 0.0
    %160 = vmatpush1.msra.mxu0 %v120
    %161 = vmatprep.subr.mxu0 0.0
    %162 = vmatpush1.msra.mxu0 %v119
    %163 = vmatprep.subr.mxu0 0.0
    %164 = vmatpush1.msra.mxu0 %v118
    %165 = vmatprep.subr.mxu0 0.0
    %166 = vmatpush2.msra.mxu0 0.0
    %167 = vmatprep.subr.mxu0 0.0
    %168 = vmatpush2.msra.mxu0 0.0
    %169 = vmatprep.subr.mxu0 0.0
    %170 = vmatpush2.msra.mxu0 0.0
    %171 = vmatprep.subr.mxu0 0.0
    %172 = vmatpush2.msra.mxu0 0.0
    %173 = vmatprep.subr.mxu0 0.0
    %174 = vmatpush2.msra.mxu0 0.0
    %175 = vmatprep.subr.mxu0 0.0
    %176 = vmatpush2.msra.mxu0 0.0
    %177 = vmatprep.subr.mxu0 0.0
    %178 = vmatpush2.msra.mxu0 0.0
    %179 = vmatprep.subr.mxu0 0.0
    %180 = vmatpush2.msra.mxu0 0.0
    %181 = vmatprep.subr.mxu0 0.0
    %182 = vmatpush2.msra.mxu0 0.0
    %183 = vmatprep.subr.mxu0 0.0
    %184 = vmatpush2.msra.mxu0 0.0
    %185 = vmatprep.subr.mxu0 0.0
    %186 = vmatpush2.msra.mxu0 0.0
    %187 = vmatprep.subr.mxu0 0.0
    %188 = vmatpush2.msra.mxu0 0.0
    %189 = vmatprep.subr.mxu0 0.0
    %190 = vmatpush2.msra.mxu0 0.0
    %191 = vmatprep.subr.mxu0 0.0
    %192 = vmatpush2.msra.mxu0 0.0
    %193 = vmatprep.subr.mxu0 0.0
    %194 = vmatpush2.msra.mxu0 0.0
    %195 = vmatprep.subr.mxu0 0.0
    %196 = vmatpush2.msra.mxu0 0.0
    %197 = vmatprep.mubr.f32.mxu0 0.0
    %198 = vmatmul.mubr.f32.gmra.mxu0 %v131
    %v199 = vpop.f32.mrf.mxu0
    %v200 = vadd.f32 %v127, %v199
    %v201 = vpop.f32.mrf.mxu0
    %202 = vdwg.mxu0
    %v203 = vmax.f32 %v200, 0.0
    %v204 = vld [vmem:[%s5] sm:$0x1]
    %v206 = vlaneseq
    %v207 = vshrl.u32 %v206, 7
    %v208 = vsub.s32 0, %v207
    %v209 = vrot.slane %v204, %v208
    %v211 = vmul.f32 %v203, %v209
    %v212 = vsel %vm129, %v211, 0.0
    %213 = vadd.xlane.f32.xlu0 %v212
    %v214 = vpop.xlane.xlu0 %213
    %s215 = sld [smem:[#allocation2]]
    %v216 = vstv %s215
    %v217 = vadd.f32 %v214, %v216
    %v218 = vxor.u32 %v217, 2147483648
    %v219 = vmul.f32 %v218, 1.442695
    %v220 = vpow.pop %v219
    %v221 = vadd.f32 %v220, 1.0
    %v222 = vrcp.pop %v221
    %v223 = vmul.f32 1.0, %v222
    %vm224 = vcmask 7168
    %225 = vst.msk [vmem:[#allocation3] sm:$0xff] %vm224, %v223
    // Predicated region
    $region30: #{tpu_custom_call.1} parent=1 // pred_check
      _
    $region31: #{tpu_custom_call.1} parent=1 // pred_check_branch
      %227 = sbr.rel (0) target = $region33
    $region32: #{tpu_custom_call.1} parent=1 // pred_region
      // Predicated region
      $region34: #{tpu_custom_call.1} parent=32 // pred_check
        _
      $region35: #{tpu_custom_call.1} parent=32 // pred_check_branch
        %229 = sbr.rel (0) target = $region37
      $region36: #{tpu_custom_call.1} parent=32 // pred_region
        // Predicated region
        $region38: #{tpu_custom_call.1} parent=36 // pred_check
          _
        $region39: #{tpu_custom_call.1} parent=36 // pred_check_branch
          %231 = sbr.rel target = $region41
        $region40: #{tpu_custom_call.1} parent=36 // pred_region
          // Predicated region
          $region53: #{tpu_custom_call.1} parent=40 // pred_check
            _
          $region54: #{tpu_custom_call.1} parent=40 // pred_check_branch
            %247 = sbr.rel (0) target = $region56
          $region55: #{tpu_custom_call.1} parent=40 // pred_region
            %s249 = ssub.s32 4, 1
            loop: start=0, step=1, limit=1
            $region57: #{tpu_custom_call.1} parent=55 // loop_pre_header
              _
            $region58: #{tpu_custom_call.1} parent=55 // loop_header
              %s251 = sphi 0, %s255
              %p252 = scmp.ge.s32.totalorder %s251, 1
              %s256 = sphi [#allocation3], [#allocation3]
              %s257 = sphi %s7, %s7
            $region59: #{tpu_custom_call.1} parent=55 // loop_header_branch
              %254 = sbr.rel (%p252) target = $region63
            $region60: #{tpu_custom_call.1} parent=55 // loop_body
              %v258 = vld [vmem:[%s256] sm:%s249]
              %259 = vst [vmem:[%s257] sm:%s249] %v258
            $region61: #{tpu_custom_call.1} parent=55 // loop_footer
              %s255 = sadd.s32 1, %s251
            $region62: #{tpu_custom_call.1} parent=55 // loop_footer_branch
              %250 = sbr.rel target = $region58
            $region63: #{tpu_custom_call.1} parent=55 // loop_exit
              _
          $region56: #{tpu_custom_call.1} parent=40 // pred_fallthru
            _
        $region41: #{tpu_custom_call.1} parent=36 // pred_fallthru
          _
        // Predicated region
        $region42: #{tpu_custom_call.1} parent=36 // pred_check
          _
        $region43: #{tpu_custom_call.1} parent=36 // pred_check_branch
          %233 = sbr.rel (0) target = $region45
        $region44: #{tpu_custom_call.1} parent=36 // pred_region
          %s235 = ssub.s32 4, 1
          loop: start=0, step=1, limit=1
          $region46: #{tpu_custom_call.1} parent=44 // loop_pre_header
            _
          $region47: #{tpu_custom_call.1} parent=44 // loop_header
            %s237 = sphi 0, %s241
            %p238 = scmp.ge.s32.totalorder %s237, 1
            %s242 = sphi [#allocation3], [#allocation3]
            %s243 = sphi %s7, %s7
          $region48: #{tpu_custom_call.1} parent=44 // loop_header_branch
            %240 = sbr.rel (%p238) target = $region52
          $region49: #{tpu_custom_call.1} parent=44 // loop_body
            %v244 = vld [vmem:[%s242] sm:%s235]
            %245 = vst [vmem:[%s243] sm:%s235] %v244
          $region50: #{tpu_custom_call.1} parent=44 // loop_footer
            %s241 = sadd.s32 1, %s237
          $region51: #{tpu_custom_call.1} parent=44 // loop_footer_branch
            %236 = sbr.rel target = $region47
          $region52: #{tpu_custom_call.1} parent=44 // loop_exit
            _
        $region45: #{tpu_custom_call.1} parent=36 // pred_fallthru
          _
      $region37: #{tpu_custom_call.1} parent=32 // pred_fallthru
        _
      %260 = vnop
    $region33: #{tpu_custom_call.1} parent=1 // pred_fallthru
      _
    // Predicated region
    $region64: #{tpu_custom_call.1} parent=1 // pred_check
      _
    $region65: #{tpu_custom_call.1} parent=1 // pred_check_branch
      %262 = sbr.rel (0) target = $region67
    $region66: #{tpu_custom_call.1} parent=1 // pred_region
      _
    $region67: #{tpu_custom_call.1} parent=1 // pred_fallthru
      _

</llo_original>
